<compile_context>
chip_gen: v7x
topology: tpu7x:2x2x1
jax: 0.10.0
libtpu: 0.0.40
codegen_flags: <defaults>
</compile_context>

<pallas_src>
import jax
import jax.numpy as jnp
from jax.experimental import pallas as pl
from jax.experimental.pallas import tpu as pltpu

D_in = 1
H = 2
D_out = 1

_LANES = 128


def _round_up(a, b):
    return ((a + b - 1) // b) * b


def _sigmoid(x):
    # EUP-friendly exact form: sigmoid(x) = 0.5 * tanh(x/2) + 0.5
    return 0.5 * jnp.tanh(0.5 * x) + 0.5


def _mlp_kernel(params_ref, x_ref, out_ref):
    # params (SMEM, f32[7]): [w1_0, w1_1, b1_0, b1_1, w2_0, w2_1, b2]
    w10 = params_ref[0]
    w11 = params_ref[1]
    b10 = params_ref[2]
    b11 = params_ref[3]
    w20 = params_ref[4]
    w21 = params_ref[5]
    b2 = params_ref[6]

    x = x_ref[...]  # (block_rows, 128) f32, batch mapped to sublanes x lanes

    # Hidden layer (D_in = 1): per-hidden-unit broadcast mul-add + sigmoid.
    a10 = _sigmoid(x * w10 + b10)
    a11 = _sigmoid(x * w11 + b11)

    # Output layer (H = 2 contraction done as two mul-adds) + sigmoid.
    out_ref[...] = _sigmoid(a10 * w20 + a11 * w21 + b2)


def mlp_forward(x, w1, b1, w2, b2, *, block_rows=512):
    """x: (N, D_in); w1: (H, D_in); b1: (H,); w2: (D_out, H); b2: (D_out,)."""
    n = x.shape[0]

    # --- layout glue (wrapper side, not the hot path) ---------------------
    # Flatten the (N, 1) input and lay the batch out lane-dense as
    # (rows_padded, 128), padded with zeros (padding is sliced off at the end).
    rows = max(pl.cdiv(n, _LANES), 1)
    rows = _round_up(rows, 8)                      # sublane alignment
    br = _round_up(min(block_rows, rows), 8)       # rows per grid tile
    rows_padded = _round_up(rows, br)
    total = rows_padded * _LANES

    xf = x.reshape(-1).astype(jnp.float32)
    xf = jnp.pad(xf, (0, total - n))
    x2d = xf.reshape(rows_padded, _LANES)

    # Pack the 7 scalar parameters into one small SMEM-resident array.
    params = jnp.concatenate(
        [w1.reshape(-1), b1.reshape(-1), w2.reshape(-1), b2.reshape(-1)]
    ).astype(jnp.float32)                          # (7,)

    grid = (rows_padded // br,)
    out2d = pl.pallas_call(
        _mlp_kernel,
        out_shape=jax.ShapeDtypeStruct((rows_padded, _LANES), jnp.float32),
        grid=grid,
        in_specs=[
            pl.BlockSpec(memory_space=pltpu.MemorySpace.SMEM),  # params
            pl.BlockSpec((br, _LANES), lambda i: (i, 0)),       # x tiles
        ],
        out_specs=pl.BlockSpec((br, _LANES), lambda i: (i, 0)),
        compiler_params=pltpu.CompilerParams(
            dimension_semantics=("parallel",),
        ),
    )(params, x2d)

    return out2d.reshape(-1)[:n].reshape(n, D_out).astype(x.dtype)


def mlp_reference(x, w1, b1, w2, b2):
    l1 = x @ w1.T + b1
    a1 = jax.nn.sigmoid(l1)
    return jax.nn.sigmoid(a1 @ w2.T + b2)


if __name__ == "__main__":
    key = jax.random.PRNGKey(0)
    k_x, k_w1, k_b1, k_w2, k_b2 = jax.random.split(key, 5)

    # Deterministic parameter init (shapes match nn.Linear: weight (out, in)).
    bound1 = 1.0 / jnp.sqrt(D_in)
    w1 = jax.random.uniform(k_w1, (H, D_in), jnp.float32, -bound1, bound1)
    b1 = jax.random.uniform(k_b1, (H,), jnp.float32, -bound1, bound1)
    bound2 = 1.0 / jnp.sqrt(H)
    w2 = jax.random.uniform(k_w2, (D_out, H), jnp.float32, -bound2, bound2)
    b2 = jax.random.uniform(k_b2, (D_out,), jnp.float32, -bound2, bound2)

    # Small batch (matches the lab's tiny-MLP usage).
    N = 8
    x = jax.random.normal(k_x, (N, D_in), dtype=jnp.float32)

    yhat = mlp_forward(x, w1, b1, w2, b2)
    jax.block_until_ready(yhat)
    y_ref = mlp_reference(x, w1, b1, w2, b2)
    assert yhat.shape == (N, D_out)
    assert jnp.allclose(yhat, y_ref, atol=1e-5, rtol=1e-5)

    # Second check: non-multiple-of-128 batch and a multi-tile grid
    # (block_rows=8 forces grid > 1) to exercise padding + pipelining.
    N2 = 2000
    x2 = jax.random.normal(jax.random.PRNGKey(1), (N2, D_in), dtype=jnp.float32)
    yhat2 = mlp_forward(x2, w1, b1, w2, b2, block_rows=8)
    jax.block_until_ready(yhat2)
    y_ref2 = mlp_reference(x2, w1, b1, w2, b2)
    assert yhat2.shape == (N2, D_out)
    assert jnp.allclose(yhat2, y_ref2, atol=1e-5, rtol=1e-5)

    print("KERNEL_OK")
</pallas_src>

<mosaic_0001>
module attributes {stable_mosaic.version = 11 : i64} {
  func.func @_mlp_kernel(%arg0: i32, %arg1: memref<7xf32, #tpu.memory_space<smem>>, %arg2: memref<8x128xf32, #tpu.memory_space<vmem>>, %arg3: memref<8x128xf32, #tpu.memory_space<vmem>>) attributes {dimension_semantics = [#tpu.dimension_semantics<parallel>], iteration_bounds = array<i64: 1>, scalar_prefetch = 0 : i64, scratch_operands = 0 : i64, tpu.core_type = #tpu.core_type<tc>, window_params = [{transform_indices = @transform_0, window_bounds = array<i64: 7>}, {transform_indices = @transform_1, window_bounds = array<i64: 8, 128>}, {transform_indices = @transform_2, window_bounds = array<i64: 8, 128>}]} {
    %c0 = arith.constant 0 : index
    %0 = memref.load %arg1[%c0] : memref<7xf32, #tpu.memory_space<smem>>
    %c1 = arith.constant 1 : index
    %1 = memref.load %arg1[%c1] : memref<7xf32, #tpu.memory_space<smem>>
    %c2 = arith.constant 2 : index
    %2 = memref.load %arg1[%c2] : memref<7xf32, #tpu.memory_space<smem>>
    %c3 = arith.constant 3 : index
    %3 = memref.load %arg1[%c3] : memref<7xf32, #tpu.memory_space<smem>>
    %c4 = arith.constant 4 : index
    %4 = memref.load %arg1[%c4] : memref<7xf32, #tpu.memory_space<smem>>
    %c5 = arith.constant 5 : index
    %5 = memref.load %arg1[%c5] : memref<7xf32, #tpu.memory_space<smem>>
    %c6 = arith.constant 6 : index
    %6 = memref.load %arg1[%c6] : memref<7xf32, #tpu.memory_space<smem>>
    %c0_0 = arith.constant 0 : index
    %c0_1 = arith.constant 0 : index
    %7 = vector.load %arg2[%c0_0, %c0_1] : memref<8x128xf32, #tpu.memory_space<vmem>>, vector<8x128xf32>
    %8 = vector.broadcast %0 : f32 to vector<8x128xf32>
    %9 = arith.mulf %7, %8 : vector<8x128xf32>
    %10 = vector.broadcast %2 : f32 to vector<8x128xf32>
    %11 = arith.addf %9, %10 : vector<8x128xf32>
    %cst = arith.constant 5.000000e-01 : f32
    %12 = vector.broadcast %cst : f32 to vector<8x128xf32>
    %13 = arith.mulf %12, %11 : vector<8x128xf32>
    %14 = math.tanh %13 : vector<8x128xf32>
    %cst_2 = arith.constant 5.000000e-01 : f32
    %15 = vector.broadcast %cst_2 : f32 to vector<8x128xf32>
    %16 = arith.mulf %15, %14 : vector<8x128xf32>
    %cst_3 = arith.constant 5.000000e-01 : f32
    %17 = vector.broadcast %cst_3 : f32 to vector<8x128xf32>
    %18 = arith.addf %16, %17 : vector<8x128xf32>
    %19 = vector.broadcast %1 : f32 to vector<8x128xf32>
    %20 = arith.mulf %7, %19 : vector<8x128xf32>
    %21 = vector.broadcast %3 : f32 to vector<8x128xf32>
    %22 = arith.addf %20, %21 : vector<8x128xf32>
    %cst_4 = arith.constant 5.000000e-01 : f32
    %23 = vector.broadcast %cst_4 : f32 to vector<8x128xf32>
    %24 = arith.mulf %23, %22 : vector<8x128xf32>
    %25 = math.tanh %24 : vector<8x128xf32>
    %cst_5 = arith.constant 5.000000e-01 : f32
    %26 = vector.broadcast %cst_5 : f32 to vector<8x128xf32>
    %27 = arith.mulf %26, %25 : vector<8x128xf32>
    %cst_6 = arith.constant 5.000000e-01 : f32
    %28 = vector.broadcast %cst_6 : f32 to vector<8x128xf32>
    %29 = arith.addf %27, %28 : vector<8x128xf32>
    %30 = vector.broadcast %4 : f32 to vector<8x128xf32>
    %31 = arith.mulf %18, %30 : vector<8x128xf32>
    %32 = vector.broadcast %5 : f32 to vector<8x128xf32>
    %33 = arith.mulf %29, %32 : vector<8x128xf32>
    %34 = arith.addf %31, %33 : vector<8x128xf32>
    %35 = vector.broadcast %6 : f32 to vector<8x128xf32>
    %36 = arith.addf %34, %35 : vector<8x128xf32>
    %cst_7 = arith.constant 5.000000e-01 : f32
    %37 = vector.broadcast %cst_7 : f32 to vector<8x128xf32>
    %38 = arith.mulf %37, %36 : vector<8x128xf32>
    %39 = math.tanh %38 : vector<8x128xf32>
    %cst_8 = arith.constant 5.000000e-01 : f32
    %40 = vector.broadcast %cst_8 : f32 to vector<8x128xf32>
    %41 = arith.mulf %40, %39 : vector<8x128xf32>
    %cst_9 = arith.constant 5.000000e-01 : f32
    %42 = vector.broadcast %cst_9 : f32 to vector<8x128xf32>
    %43 = arith.addf %41, %42 : vector<8x128xf32>
    %c0_10 = arith.constant 0 : index
    %c0_11 = arith.constant 0 : index
    %44 = vector.load %arg3[%c0_10, %c0_11] : memref<8x128xf32, #tpu.memory_space<vmem>>, vector<8x128xf32>
    tpu.vector_store %arg3[%c0_10, %c0_11], %43 {strides = array<i32>} : memref<8x128xf32, #tpu.memory_space<vmem>>, vector<8x128xf32>,
    return
  }
  func.func @transform_0(%arg0: i32) -> i32 {
    %c0_i32 = arith.constant 0 : i32
    %c0_i32_0 = arith.constant 0 : i32
    return %c0_i32 : i32
  }
  func.func @transform_1(%arg0: i32) -> (i32, i32) {
    %c0_i32 = arith.constant 0 : i32
    %c0_i32_0 = arith.constant 0 : i32
    return %arg0, %c0_i32 : i32, i32
  }
  func.func @transform_2(%arg0: i32) -> (i32, i32) {
    %c0_i32 = arith.constant 0 : i32
    %c0_i32_0 = arith.constant 0 : i32
    return %arg0, %c0_i32 : i32, i32
  }
}

</mosaic_0001>

<llo_original>
// kernel: tpu_custom_call.1
$region0: #{tpu_custom_call.1}
  #allocation0 [shape = 'u32[]', space=smem, size = 0x4, offset = 0x4, fixed_abs, tag = 'smem constant byte address 0x4 - core index']
  #allocation1 [shape = 'u32[144,128]{1,0:T(1,128)}', space=vmem, size = 0x12000, scoped, tag = 'internal scratch']
  %s0 = inlined_call_operand.hbm [shape: f32[7], index: 0, kind: input, shape index: {}]
  %s1 = inlined_call_operand.hbm [shape: f32[8,128], index: 1, kind: input, shape index: {}]
  %s2 = inlined_call_operand.hbm [shape: f32[8,128], index: 2, kind: output, shape index: {}]
  %s3 = sld [smem:[#allocation0]]
  $region26: #{tpu_custom_call.1} parent=0
    _
  %s5 = ssub.s32 1, %s3
  %s6 = scalar_select 0, %s5, %s3
  $region1: #{tpu_custom_call.1} parent=0
    #allocation2 [shape = 'u8[512]{0}', space=smem, size = 0x200, scoped, tag = 'input window, operand 0, single buffered']
    #allocation3 [shape = 's32[1]{0}', space=sflag, size = 0x4, scoped, tag = 'scoped memory for tpu_custom_call.1']
    #allocation4 [shape = 's32[1]{0}', space=sflag, size = 0x4, scoped, tag = 'scoped memory for tpu_custom_call.1']
    #allocation5 [shape = 's32[1]{0}', space=sflag, size = 0x4, scoped, tag = 'scoped memory for tpu_custom_call.1']
    #allocation6 [shape = 'u8[4096]{0}', space=vmem, size = 0x1000, scoped, tag = 'input window, operand 1, single buffered']
    #allocation7 [shape = 'u8[4096]{0}', space=vmem, size = 0x1000, scoped, tag = 'output window, operand 0, single buffered']
    %7 = vsyncpa [#allocation5], 0
    %8 = vsyncpa [#allocation3], 0
    %9 = vsyncpa [#allocation4], 0
    // Predicated region
    $region2: #{tpu_custom_call.1} parent=1 // pred_check
      _
    $region3: #{tpu_custom_call.1} parent=1 // pred_check_branch
      %11 = sbr.rel (0) target = $region5
    $region4: #{tpu_custom_call.1} parent=1 // pred_region
      %s13 = ssub.s32 16, 16
      %14 = vsyncadd [#allocation5], %s13
      %17 = dma.hbm_to_smem %s0, 16, [#allocation2], [#allocation5]
    $region5: #{tpu_custom_call.1} parent=1 // pred_fallthru
      _
    // Predicated region
    $region6: #{tpu_custom_call.1} parent=1 // pred_check
      _
    $region7: #{tpu_custom_call.1} parent=1 // pred_check_branch
      %19 = sbr.rel (0) target = $region9
    $region8: #{tpu_custom_call.1} parent=1 // pred_region
      %s21 = ssub.s32 128, 128
      %22 = vsyncadd [#allocation3], %s21
      %s24 = sshll.u32 [#allocation6], 4
      %s25 = int_to_ptr.vmem [resolvable:$true] %s24
      %27 = dma.hbm_to_vmem [thread:$0]  %s1, 128, %s25, [#allocation3]
    $region9: #{tpu_custom_call.1} parent=1 // pred_fallthru
      _
    // Predicated region
    $region10: #{tpu_custom_call.1} parent=1 // pred_check
      _
    $region11: #{tpu_custom_call.1} parent=1 // pred_check_branch
      %29 = sbr.rel (0) target = $region13
    $region12: #{tpu_custom_call.1} parent=1 // pred_region
      %30 = dma.done [#allocation5], 16
    $region13: #{tpu_custom_call.1} parent=1 // pred_fallthru
      _
    // Predicated region
    $region14: #{tpu_custom_call.1} parent=1 // pred_check
      _
    $region15: #{tpu_custom_call.1} parent=1 // pred_check_branch
      %32 = sbr.rel (0) target = $region17
    $region16: #{tpu_custom_call.1} parent=1 // pred_region
      %33 = dma.done [#allocation3], 128
    $region17: #{tpu_custom_call.1} parent=1 // pred_fallthru
      _
    %34 = sfence
    %s35 = sld [smem:[#allocation2]]
    %s36 = sld [smem:[#allocation2 + $0x1]]
    %s37 = sld [smem:[#allocation2 + $0x2]]
    %s38 = sld [smem:[#allocation2 + $0x3]]
    %s39 = sld [smem:[#allocation2 + $0x4]]
    %s40 = sld [smem:[#allocation2 + $0x5]]
    %s41 = sld [smem:[#allocation2 + $0x6]]
    %v42 = vld [vmem:[#allocation6] sm:$0xff]
    %v43 = vstv %s35
    %v44 = vmul.f32 %v42, %v43
    %v45 = vstv %s37
    %v46 = vadd.f32 %v44, %v45
    %v47 = vmul.f32 %v46, 0.5
    %v48 = vtanh.pop %v47
    %v49 = vmul.f32 %v48, 0.5
    %v50 = vadd.f32 %v49, 0.5
    %v51 = vstv %s36
    %v52 = vmul.f32 %v42, %v51
    %v53 = vstv %s38
    %v54 = vadd.f32 %v52, %v53
    %v55 = vmul.f32 %v54, 0.5
    %v56 = vtanh.pop %v55
    %v57 = vmul.f32 %v56, 0.5
    %v58 = vadd.f32 %v57, 0.5
    %v59 = vstv %s39
    %v60 = vmul.f32 %v50, %v59
    %v61 = vstv %s40
    %v62 = vmul.f32 %v58, %v61
    %v63 = vadd.f32 %v60, %v62
    %v64 = vstv %s41
    %v65 = vadd.f32 %v63, %v64
    %v66 = vmul.f32 %v65, 0.5
    %v67 = vtanh.pop %v66
    %v68 = vmul.f32 %v67, 0.5
    %v69 = vadd.f32 %v68, 0.5
    %70 = vst [vmem:[#allocation7] sm:$0xff] %v69
    // Predicated region
    $region18: #{tpu_custom_call.1} parent=1 // pred_check
      _
    $region19: #{tpu_custom_call.1} parent=1 // pred_check_branch
      %72 = sbr.rel (0) target = $region21
    $region20: #{tpu_custom_call.1} parent=1 // pred_region
      %s74 = ssub.s32 128, 128
      %75 = vsyncadd [#allocation4], %s74
      %s77 = sshll.u32 [#allocation7], 4
      %s78 = int_to_ptr.vmem [resolvable:$true] %s77
      %80 = dma.vmem_to_hbm [thread:$0]  %s78, 128, %s2, [#allocation4]
    $region21: #{tpu_custom_call.1} parent=1 // pred_fallthru
      _
    // Predicated region
    $region22: #{tpu_custom_call.1} parent=1 // pred_check
      _
    $region23: #{tpu_custom_call.1} parent=1 // pred_check_branch
      %82 = sbr.rel (0) target = $region25
    $region24: #{tpu_custom_call.1} parent=1 // pred_region
      %83 = dma.done [#allocation4], 128
    $region25: #{tpu_custom_call.1} parent=1 // pred_fallthru
      _
    %84 = vsyncpa [#allocation3], 1
    %85 = vsyncpa [#allocation4], 1
    %86 = vsyncpa [#allocation5], 1

</llo_original>
